<compile_context>
chip_gen: v7x
topology: tpu7x:2x2x1
jax: 0.10.0
libtpu: 0.0.40
codegen_flags: <defaults>
</compile_context>

<pallas_src>
import jax
import jax.numpy as jnp
import numpy as np
from jax import lax
from jax.experimental import pallas as pl
from jax.experimental.pallas import tpu as pltpu

MARGIN = 0.5
EPS = 1e-8  # matches torch.nn.functional.cosine_similarity eps


def _round_up(x, m):
    return -(-x // m) * m


def _vmem_capacity_bytes():
    try:
        return int(pltpu.get_tpu_info().vmem_capacity_bytes)
    except Exception:
        return 64 * 1024 * 1024        # conservative fallback: v7x per-TC physical VMEM


def _choose_tiles(B, D, itemsize):
    """Pick (tb, nb, td, nd, vmem_limit) for the distance pass."""
    cap = _vmem_capacity_bytes()
    # Tiling budget: ~55% of physical VMEM (v7x 64 MiB -> ~35 MiB; v5e/v6e 128 MiB -> ~70 MiB),
    # leaving real headroom for compiler temporaries / mask buffers.
    budget = min(int(cap * 0.55), 80 * 1024 * 1024)
    usable = int(budget * 0.85)
    # Bytes per (row, col) tile element:
    #   2 inputs x 2 pipeline buffers x itemsize  +  ~5 f32 intermediates
    #   (a/b upcasts + the fused (3*tb, td) MXU operand); headroom covers mask temporaries.
    per_elem = 4 * itemsize + 5 * 4

    # --- B tiling ---------------------------------------------------------
    if B <= 256:
        tb = B                       # single block (block == full dim: always legal)
    else:
        # >=2 blocks so v7x's two TensorCores split the HBM-bound pass; 128-aligned so the
        # (1, tb) dist output block is legal; shrink until a >=512-wide D tile still fits.
        tb = min(2048, _round_up(max(128, B // 2), 128))
        while tb > 128 and tb * min(_round_up(D, 128), 512) * per_elem > usable:
            tb //= 2
    nb = -(-B // tb)

    # --- D tiling: biggest 128-multiple tile fitting the budget ------------
    td_cap = max(128, (usable // (tb * per_elem)) // 128 * 128)
    if D <= td_cap:
        td, nd = D, 1                # whole feature dim in one block; no masking needed
    else:
        nd = -(-D // td_cap)
        td = min(td_cap, _round_up(-(-D // nd), 128))   # balanced, 128-aligned tiles

    footprint = (4 * tb * td * itemsize      # 2 inputs x 2 pipeline buffers
                 + 5 * tb * td * 4           # f32 upcasts + fused (3*tb, td) MXU operand
                 + 8 * 3 * tb * 4            # lane-dense accumulator scratch
                 + (1 << 16))                # outputs / labels / constants
    vmem_limit = min(int(cap * 0.9),
                     max(footprint + footprint // 2, 32 * 1024 * 1024))
    return tb, nb, td, nd, vmem_limit


def _make_distance_kernel(D, td, nd):
    need_mask = (nd > 1) and (D % td != 0)

    def kernel(a_ref, b_ref, dist_ref, acc_ref):
        k = pl.program_id(1)
        last = pl.num_programs(1) - 1
        tb = a_ref.shape[0]

        @pl.when(k == 0)
        def _init():
            acc_ref[...] = jnp.zeros_like(acc_ref)

        # Per-tile upcast (bf16 inputs are widened one (tb, td) block at a time).
        a = a_ref[...].astype(jnp.float32)
        b = b_ref[...].astype(jnp.float32)
        if need_mask:
            # Ragged last D tile: zero the out-of-range columns in-kernel instead of paying
            # an HBM-side jnp.pad copy of the full embeddings.
            col = lax.broadcasted_iota(jnp.int32, a.shape, 1)
            valid = col < (D - k * td)
            a = jnp.where(valid, a, 0.0)
            b = jnp.where(valid, b, 0.0)

        # Fused cross-lane reduction: one ones-contraction on the otherwise-idle MXU yields
        # the three per-row sums (a.b, ||a||^2, ||b||^2) lane-dense in a single (8, 3*tb)
        # slab, so the accumulate below is one aligned, unmasked full-slab store per step.
        rhs = jnp.concatenate([a * b, a * a, b * b], axis=0)        # (3*tb, td) f32
        ones8 = jnp.ones((8, a.shape[1]), jnp.float32)
        acc_ref[...] += lax.dot_general(
            ones8, rhs, (((1,), (1,)), ((), ())),
            precision=lax.Precision.HIGHEST,          # keep f32 accuracy through the MXU
            preferred_element_type=jnp.float32)       # (8, 3*tb)

        @pl.when(k == last)
        def _finalize():
            dot = acc_ref[0:1, 0:tb]                  # (1, tb) lane-dense
            na2 = acc_ref[0:1, tb:2 * tb]
            nb2 = acc_ref[0:1, 2 * tb:3 * tb]
            # cosine distance: 1 - dot / max(||a||*||b||, EPS).  rsqrt runs on the EUP;
            # clamping the squared norm product against EPS^2 equals clamping the product
            # of norms against EPS (the torch reference).
            inv_norm = lax.rsqrt(jnp.maximum(na2 * nb2, jnp.float32(EPS * EPS)))
            dist_ref[...] = 1.0 - dot * inv_norm      # (1, tb)

    return kernel


def _make_select_kernel(margin):
    margin = float(margin)

    def kernel(dist_ref, lbl_ref, loss_ref):
        dist = dist_ref[...]                          # (1, B) f32, lane-dense
        lbl = lbl_ref[...]                            # (1, B) int32
        is_pos = lbl == 1
        is_neg = lbl == 0
        onef = jnp.float32(1.0)
        zerof = jnp.float32(0.0)
        neg_inf = jnp.float32(-jnp.inf)
        pos_inf = jnp.float32(jnp.inf)

        n_pos = jnp.sum(jnp.where(is_pos, onef, zerof), keepdims=True)   # (1, 1)
        n_neg = jnp.sum(jnp.where(is_neg, onef, zerof), keepdims=True)

        poss_max = jnp.max(jnp.where(is_pos, dist, neg_inf), keepdims=True)
        negs_min = jnp.min(jnp.where(is_neg, dist, pos_inf), keepdims=True)
        poss_mean = jnp.sum(jnp.where(is_pos, dist, zerof), keepdims=True) / n_pos
        negs_mean = jnp.sum(jnp.where(is_neg, dist, zerof), keepdims=True) / n_neg

        # torch: poss.max() if len(poss) > 1 else negs.mean()   (and the symmetric case)
        neg_thresh = jnp.where(n_pos > 1.0, poss_max, negs_mean)         # (1, 1)
        pos_thresh = jnp.where(n_neg > 1.0, negs_min, poss_mean)

        sel_neg = jnp.logical_and(is_neg, dist < neg_thresh)             # (1, B)
        sel_pos = jnp.logical_and(is_pos, dist > pos_thresh)

        positive_loss = jnp.sum(jnp.where(sel_pos, dist * dist, zerof), keepdims=True)
        hinge = jnp.maximum(margin - dist, zerof)
        negative_loss = jnp.sum(jnp.where(sel_neg, hinge * hinge, zerof), keepdims=True)

        total = (jnp.sum(jnp.where(sel_pos, onef, zerof), keepdims=True)
                 + jnp.sum(jnp.where(sel_neg, onef, zerof), keepdims=True))
        # total == 0 yields NaN, matching the 0/0 behaviour of the PyTorch reference.
        loss_ref[...] = (positive_loss + negative_loss) / total          # (1, 1)

    return kernel


def online_contrastive_loss(emb_a, emb_b, labels, *, margin=MARGIN, _tile_override=None):
    """emb_a, emb_b: (B, D) float; labels: (B,) int (1 = positive, 0 = negative pair).
    Returns the scalar f32 OnlineContrastiveLoss (cosine-distance metric)."""
    B, D = emb_a.shape
    assert emb_b.shape == (B, D)

    itemsize = jnp.dtype(emb_a.dtype).itemsize
    if _tile_override is not None:                    # test hook (tb, td)
        tb, td = _tile_override
        nb, nd = -(-B // tb), -(-D // td)
        vmem_limit = 64 * 1024 * 1024
    else:
        tb, nb, td, nd, vmem_limit = _choose_tiles(B, D, itemsize)

    cost = pl.CostEstimate(
        flops=int(51 * B * D),                        # 3 products + ones-contraction
        transcendentals=int(B),                       # one rsqrt per pair
        bytes_accessed=int(2 * B * D * itemsize + 8 * B + 4),
    )

    # Pass 1: per-pair cosine distance, lane-dense (1, B). B axis is "parallel" (on v7x the
    # two TensorCores split the HBM-bound phase); D axis is the "arbitrary" reduction.
    dist = pl.pallas_call(
        _make_distance_kernel(D, td, nd),
        out_shape=jax.ShapeDtypeStruct((1, B), jnp.float32),
        grid_spec=pltpu.PrefetchScalarGridSpec(
            num_scalar_prefetch=0,
            grid=(nb, nd),
            in_specs=[
                pl.BlockSpec((tb, td), lambda bi, k: (bi, k)),
                pl.BlockSpec((tb, td), lambda bi, k: (bi, k)),
            ],
            out_specs=pl.BlockSpec((1, tb), lambda bi, k: (0, bi)),
            scratch_shapes=[pltpu.VMEM((8, 3 * tb), jnp.float32)],
        ),
        compiler_params=pltpu.CompilerParams(
            dimension_semantics=("parallel", "arbitrary"),
            vmem_limit_bytes=vmem_limit,
        ),
        cost_estimate=cost,
    )(emb_a, emb_b)

    # Pass 2: hard-pair selection + loss on the tiny (1, B) distance slab.
    lbl = labels.reshape(1, B).astype(jnp.int32)
    loss = pl.pallas_call(
        _make_select_kernel(margin),
        out_shape=jax.ShapeDtypeStruct((1, 1), jnp.float32),
        grid_spec=pltpu.PrefetchScalarGridSpec(
            num_scalar_prefetch=0,
            grid=(1,),
            in_specs=[
                pl.BlockSpec((1, B), lambda i: (0, 0)),
                pl.BlockSpec((1, B), lambda i: (0, 0)),
            ],
            out_specs=pl.BlockSpec((1, 1), lambda i: (0, 0)),
        ),
        compiler_params=pltpu.CompilerParams(dimension_semantics=("arbitrary",)),
    )(dist, lbl)
    return loss[0, 0]


def _reference_loss(a, b, labels, margin=MARGIN):
    """Pure numpy reimplementation of the PyTorch forward (cosine distance)."""
    a = np.asarray(a, np.float32)
    b = np.asarray(b, np.float32)
    labels = np.asarray(labels)
    dot = (a * b).sum(-1)
    na = np.sqrt((a * a).sum(-1))
    nb = np.sqrt((b * b).sum(-1))
    dist = 1.0 - dot / np.maximum(na * nb, EPS)
    negs = dist[labels == 0]
    poss = dist[labels == 1]
    neg_thresh = poss.max() if len(poss) > 1 else negs.mean()
    pos_thresh = negs.min() if len(negs) > 1 else poss.mean()
    negative_pairs = negs[negs < neg_thresh]
    positive_pairs = poss[poss > pos_thresh]
    positive_loss = (positive_pairs ** 2).sum()
    negative_loss = (np.maximum(margin - negative_pairs, 0.0) ** 2).sum()
    total = len(positive_pairs) + len(negative_pairs)
    return (positive_loss + negative_loss) / total


if __name__ == "__main__":
    key = jax.random.PRNGKey(0)

    def run_case(B, D, n_pos, tile_override=None):
        k1, k2 = jax.random.split(jax.random.fold_in(key, 131 * B + D))
        emb_a = jax.random.normal(k1, (B, D), dtype=jnp.float32)
        emb_b = jax.random.normal(k2, (B, D), dtype=jnp.float32)
        labels = jnp.array([1] * n_pos + [0] * (B - n_pos), dtype=jnp.int32)
        loss = jax.block_until_ready(
            online_contrastive_loss(emb_a, emb_b, labels, _tile_override=tile_override))
        ref = _reference_loss(np.asarray(emb_a), np.asarray(emb_b), np.asarray(labels))
        assert np.isclose(float(loss), float(ref), rtol=5e-3, atol=1e-5), \
            (B, D, float(loss), float(ref))

    run_case(B=8, D=32, n_pos=4)        # single block (block == full dims)
    run_case(B=16, D=1024, n_pos=7)     # single block under the enlarged VMEM budget
    run_case(B=8, D=640, n_pos=3)       # non-128-multiple D, single block, no padding
    # Exercise the tiled paths: 2 B-blocks (ragged last block) x 3 D-tiles (masked tail).
    run_case(B=250, D=320, n_pos=100, tile_override=(128, 128))
    print("KERNEL_OK")
</pallas_src>

<mosaic_0001>
module attributes {stable_mosaic.version = 11 : i64} {
  func.func @kernel(%arg0: i32, %arg1: i32, %arg2: memref<8x32xf32, #tpu.memory_space<vmem>>, %arg3: memref<8x32xf32, #tpu.memory_space<vmem>>, %arg4: memref<1x8xf32, #tpu.memory_space<vmem>>, %arg5: memref<8x24xf32, #tpu.memory_space<vmem>>) attributes {dimension_semantics = [#tpu.dimension_semantics<parallel>, #tpu.dimension_semantics<arbitrary>], iteration_bounds = array<i64: 1, 1>, scalar_prefetch = 0 : i64, scratch_operands = 1 : i64, tpu.core_type = #tpu.core_type<tc>, window_params = [{transform_indices = @transform_0, window_bounds = array<i64: 8, 32>}, {transform_indices = @transform_1, window_bounds = array<i64: 8, 32>}, {transform_indices = @transform_2, window_bounds = array<i64: 1, 8>}]} {
    %c0_i32 = arith.constant 0 : i32
    %0 = arith.cmpi eq, %arg1, %c0_i32 : i32
    %1 = arith.extui %0 : i1 to i32
    %c0_i32_0 = arith.constant 0 : i32
    %2 = arith.cmpi ne, %1, %c0_i32_0 : i32
    scf.if %2 {
      %cst_11 = arith.constant 0.000000e+00 : f32
      %17 = vector.broadcast %cst_11 : f32 to vector<8x24xf32>
      %c0_12 = arith.constant 0 : index
      %c0_13 = arith.constant 0 : index
      %18 = vector.load %arg5[%c0_12, %c0_13] : memref<8x24xf32, #tpu.memory_space<vmem>>, vector<8x24xf32>
      tpu.vector_store %arg5[%c0_12, %c0_13], %17 {strides = array<i32>} : memref<8x24xf32, #tpu.memory_space<vmem>>, vector<8x24xf32>,
    } else {
    }
    %c0 = arith.constant 0 : index
    %c0_1 = arith.constant 0 : index
    %3 = vector.load %arg2[%c0, %c0_1] : memref<8x32xf32, #tpu.memory_space<vmem>>, vector<8x32xf32>
    %c0_2 = arith.constant 0 : index
    %c0_3 = arith.constant 0 : index
    %4 = vector.load %arg3[%c0_2, %c0_3] : memref<8x32xf32, #tpu.memory_space<vmem>>, vector<8x32xf32>
    %5 = arith.mulf %3, %4 : vector<8x32xf32>
    %6 = arith.mulf %3, %3 : vector<8x32xf32>
    %7 = arith.mulf %4, %4 : vector<8x32xf32>
    %8 = tpu.concatenate %5, %6, %7 in 0 : vector<8x32xf32>, vector<8x32xf32>, vector<8x32xf32> -> vector<24x32xf32>
    %cst = arith.constant 1.000000e+00 : f32
    %9 = vector.broadcast %cst : f32 to vector<8x32xf32>
    %c0_4 = arith.constant 0 : index
    %c0_5 = arith.constant 0 : index
    %10 = vector.load %arg5[%c0_4, %c0_5] : memref<8x24xf32, #tpu.memory_space<vmem>>, vector<8x24xf32>
    %cst_6 = arith.constant dense<0.000000e+00> : vector<8x24xf32>
    %11 = tpu.matmul %9, %8, %cst_6 {dimension_numbers = #tpu.dot_dimension_numbers<[1], [1], [0], [0], [0, 0, 1, 0], [], []>, precision = #tpu.contract_precision<fp32>} : vector<8x32xf32>, vector<24x32xf32>, vector<8x24xf32> -> vector<8x24xf32>
    %12 = arith.addf %10, %11 : vector<8x24xf32>
    %c0_7 = arith.constant 0 : index
    %c0_8 = arith.constant 0 : index
    %13 = vector.load %arg5[%c0_7, %c0_8] : memref<8x24xf32, #tpu.memory_space<vmem>>, vector<8x24xf32>
    tpu.vector_store %arg5[%c0_7, %c0_8], %12 {strides = array<i32>} : memref<8x24xf32, #tpu.memory_space<vmem>>, vector<8x24xf32>,
    %c0_i32_9 = arith.constant 0 : i32
    %14 = arith.cmpi eq, %arg1, %c0_i32_9 : i32
    %15 = arith.extui %14 : i1 to i32
    %c0_i32_10 = arith.constant 0 : i32
    %16 = arith.cmpi ne, %15, %c0_i32_10 : i32
    scf.if %16 {
      %c0_11 = arith.constant 0 : index
      %c0_12 = arith.constant 0 : index
      %17 = vector.load %arg5[%c0_11, %c0_12] : memref<8x24xf32, #tpu.memory_space<vmem>>, vector<1x8xf32>
      %c0_13 = arith.constant 0 : index
      %c8 = arith.constant 8 : index
      %18 = vector.load %arg5[%c0_13, %c8] : memref<8x24xf32, #tpu.memory_space<vmem>>, vector<1x8xf32>
      %c0_14 = arith.constant 0 : index
      %c16 = arith.constant 16 : index
      %19 = vector.load %arg5[%c0_14, %c16] : memref<8x24xf32, #tpu.memory_space<vmem>>, vector<1x8xf32>
      %20 = arith.mulf %18, %19 : vector<1x8xf32>
      %cst_15 = arith.constant 1.000000e-16 : f32
      %21 = vector.broadcast %cst_15 : f32 to vector<1x8xf32>
      %22 = arith.maximumf %20, %21 : vector<1x8xf32>
      %23 = math.rsqrt %22 : vector<1x8xf32>
      %24 = arith.mulf %17, %23 : vector<1x8xf32>
      %cst_16 = arith.constant 1.000000e+00 : f32
      %25 = vector.broadcast %cst_16 : f32 to vector<1x8xf32>
      %26 = arith.subf %25, %24 : vector<1x8xf32>
      %c0_17 = arith.constant 0 : index
      %c0_18 = arith.constant 0 : index
      %27 = vector.load %arg4[%c0_17, %c0_18] : memref<1x8xf32, #tpu.memory_space<vmem>>, vector<1x8xf32>
      tpu.vector_store %arg4[%c0_17, %c0_18], %26 {strides = array<i32>} : memref<1x8xf32, #tpu.memory_space<vmem>>, vector<1x8xf32>,
    } else {
    }
    return
  }
  func.func @transform_0(%arg0: i32, %arg1: i32) -> (i32, i32) {
    %c0_i32 = arith.constant 0 : i32
    return %arg0, %arg1 : i32, i32
  }
  func.func @transform_1(%arg0: i32, %arg1: i32) -> (i32, i32) {
    %c0_i32 = arith.constant 0 : i32
    return %arg0, %arg1 : i32, i32
  }
  func.func @transform_2(%arg0: i32, %arg1: i32) -> (i32, i32) {
    %c0_i32 = arith.constant 0 : i32
    %c0_i32_0 = arith.constant 0 : i32
    return %c0_i32, %arg0 : i32, i32
  }
}

</mosaic_0001>

<llo_original>
// kernel: tpu_custom_call.1
$region0: #{tpu_custom_call.1}
  #allocation0 [shape = 'u32[]', space=smem, size = 0x4, offset = 0x4, fixed_abs, tag = 'smem constant byte address 0x4 - core index']
  #allocation1 [shape = 'u32[144,128]{1,0:T(1,128)}', space=vmem, size = 0x12000, scoped, tag = 'internal scratch']
  #allocation2 [shape = 'f32[8,24]{1,0:T(8,128)}', space=vmem, size = 0x1000, scoped, tag = 'scratch operand']
  %s0 = inlined_call_operand.hbm [shape: f32[8,32], index: 0, kind: input, shape index: {}]
  %s1 = inlined_call_operand.hbm [shape: f32[8,32], index: 1, kind: input, shape index: {}]
  %s2 = inlined_call_operand.hbm [shape: f32[1,8], index: 2, kind: output, shape index: {}]
  %s3 = sld [smem:[#allocation0]]
  $region34: #{tpu_custom_call.1} parent=0
    _
  %s5 = ssub.s32 1, %s3
  %s6 = scalar_select 0, %s5, %s3
  $region1: #{tpu_custom_call.1} parent=0
    #allocation3 [shape = 'u8[4096]{0}', space=vmem, size = 0x1000, scoped, tag = 'input window, operand 0, single buffered']
    #allocation4 [shape = 's32[1]{0}', space=sflag, size = 0x4, scoped, tag = 'scoped memory for tpu_custom_call.1']
    #allocation5 [shape = 's32[1]{0}', space=sflag, size = 0x4, scoped, tag = 'scoped memory for tpu_custom_call.1']
    #allocation6 [shape = 'u8[4096]{0}', space=vmem, size = 0x1000, scoped, tag = 'input window, operand 1, single buffered']
    #allocation7 [shape = 's32[1]{0}', space=sflag, size = 0x4, scoped, tag = 'scoped memory for tpu_custom_call.1']
    #allocation8 [shape = 'u8[512]{0}', space=vmem, size = 0x400, scoped, tag = 'output window, operand 0, single buffered']
    %7 = vsyncpa [#allocation4], 0
    %8 = vsyncpa [#allocation7], 0
    %9 = vsyncpa [#allocation5], 0
    // Predicated region
    $region2: #{tpu_custom_call.1} parent=1 // pred_check
      _
    $region3: #{tpu_custom_call.1} parent=1 // pred_check_branch
      %11 = sbr.rel (0) target = $region5
    $region4: #{tpu_custom_call.1} parent=1 // pred_region
      %s13 = ssub.s32 128, 128
      %14 = vsyncadd [#allocation4], %s13
      %s16 = sshll.u32 [#allocation3], 4
      %s17 = int_to_ptr.vmem [resolvable:$true] %s16
      %19 = dma.hbm_to_vmem [thread:$0]  %s0, 128, %s17, [#allocation4]
    $region5: #{tpu_custom_call.1} parent=1 // pred_fallthru
      _
    // Predicated region
    $region6: #{tpu_custom_call.1} parent=1 // pred_check
      _
    $region7: #{tpu_custom_call.1} parent=1 // pred_check_branch
      %21 = sbr.rel (0) target = $region9
    $region8: #{tpu_custom_call.1} parent=1 // pred_region
      %s23 = ssub.s32 128, 128
      %24 = vsyncadd [#allocation7], %s23
      %s26 = sshll.u32 [#allocation6], 4
      %s27 = int_to_ptr.vmem [resolvable:$true] %s26
      %29 = dma.hbm_to_vmem [thread:$0]  %s1, 128, %s27, [#allocation7]
    $region9: #{tpu_custom_call.1} parent=1 // pred_fallthru
      _
    // Predicated region
    $region10: #{tpu_custom_call.1} parent=1 // pred_check
      _
    $region11: #{tpu_custom_call.1} parent=1 // pred_check_branch
      %31 = sbr.rel (0) target = $region13
    $region12: #{tpu_custom_call.1} parent=1 // pred_region
      %32 = dma.done [#allocation4], 128
    $region13: #{tpu_custom_call.1} parent=1 // pred_fallthru
      _
    // Predicated region
    $region14: #{tpu_custom_call.1} parent=1 // pred_check
      _
    $region15: #{tpu_custom_call.1} parent=1 // pred_check_branch
      %34 = sbr.rel (0) target = $region17
    $region16: #{tpu_custom_call.1} parent=1 // pred_region
      %35 = dma.done [#allocation7], 128
    $region17: #{tpu_custom_call.1} parent=1 // pred_fallthru
      _
    %p36 = scmp.eq.s32.totalorder 0, 0
    // Predicated region
    $region18: #{tpu_custom_call.1} parent=1 // pred_check
      %p37 = pneg %p36
    $region19: #{tpu_custom_call.1} parent=1 // pred_check_branch
      %39 = sbr.rel (%p37) target = $region21
    $region20: #{tpu_custom_call.1} parent=1 // pred_region
      %vm40 = vcmask 195584
      %41 = vst.msk [vmem:[#allocation2] sm:$0xff] %vm40, 0.0
    $region21: #{tpu_custom_call.1} parent=1 // pred_fallthru
      _
    %v42 = vld [vmem:[#allocation3] sm:$0xff]
    %v43 = vld [vmem:[#allocation6] sm:$0xff]
    %v44 = vmul.f32 %v42, %v43
    %v45 = vmul.f32 %v42, %v42
    %v46 = vmul.f32 %v43, %v43
    %v47 = vld [vmem:[#allocation2] sm:$0xff]
    %vm48 = vcmask 261120
    %v50 = vsel %vm48, 1.0, 0
    %v53 = vsel %vm48, %v44, 0
    %v56 = vsel %vm48, %v45, 0
    %v59 = vsel %vm48, %v46, 0
    %61 = vmatprep.subr.mxu0 0.0
    %v62 = vand.u32 %v53, 4294901760
    %63 = vmatpush1.xpose.msra.mxu0 %v62
    %64 = vmatprep.subr.mxu0 0.0
    %v65 = vand.u32 %v56, 4294901760
    %66 = vmatpush1.xpose.msra.mxu0 %v65
    %67 = vmatprep.subr.mxu0 0.0
    %v68 = vand.u32 %v59, 4294901760
    %69 = vmatpush1.xpose.msra.mxu0 %v68
    %70 = vmatprep.subr.mxu0 0.0
    %71 = vmatpush1.xpose.msra.mxu0 0.0
    %72 = vmatprep.subr.mxu0 0.0
    %73 = vmatpush1.xpose.msra.mxu0 0.0
    %74 = vmatprep.subr.mxu0 0.0
    %75 = vmatpush1.xpose.msra.mxu0 0.0
    %76 = vmatprep.subr.mxu0 0.0
    %77 = vmatpush1.xpose.msra.mxu0 0.0
    %78 = vmatprep.subr.mxu0 0.0
    %79 = vmatpush1.xpose.msra.mxu0 0.0
    %80 = vmatprep.subr.mxu0 0.0
    %81 = vmatpush1.xpose.msra.mxu0 0.0
    %82 = vmatprep.subr.mxu0 0.0
    %83 = vmatpush1.xpose.msra.mxu0 0.0
    %84 = vmatprep.subr.mxu0 0.0
    %85 = vmatpush1.xpose.msra.mxu0 0.0
    %86 = vmatprep.subr.mxu0 0.0
    %87 = vmatpush1.xpose.msra.mxu0 0.0
    %88 = vmatprep.subr.mxu0 0.0
    %89 = vmatpush1.xpose.msra.mxu0 0.0
    %90 = vmatprep.subr.mxu0 0.0
    %91 = vmatpush1.xpose.msra.mxu0 0.0
    %92 = vmatprep.subr.mxu0 0.0
    %93 = vmatpush1.xpose.msra.mxu0 0.0
    %94 = vmatprep.subr.mxu0 0.0
    %95 = vmatpush1.xpose.msra.mxu0 0.0
    %96 = vmatprep.subr.mxu0 0.0
    %97 = vmatpush1.xpose.msra.mxu0 0.0
    %98 = vmatprep.subr.mxu0 0.0
    %99 = vmatpush1.xpose.msra.mxu0 0.0
    %100 = vmatprep.subr.mxu0 0.0
    %101 = vmatpush1.xpose.msra.mxu0 0.0
    %102 = vmatprep.subr.mxu0 0.0
    %103 = vmatpush1.xpose.msra.mxu0 0.0
    %104 = vmatprep.subr.mxu0 0.0
    %105 = vmatpush1.xpose.msra.mxu0 0.0
    %106 = vmatprep.subr.mxu0 0.0
    %107 = vmatpush1.xpose.msra.mxu0 0.0
    %108 = vmatprep.subr.mxu0 0.0
    %109 = vmatpush1.xpose.msra.mxu0 0.0
    %110 = vmatprep.subr.mxu0 0.0
    %111 = vmatpush1.xpose.msra.mxu0 0.0
    %112 = vmatprep.subr.mxu0 0.0
    %113 = vmatpush1.xpose.msra.mxu0 0.0
    %114 = vmatprep.subr.mxu0 0.0
    %115 = vmatpush1.xpose.msra.mxu0 0.0
    %116 = vmatprep.subr.mxu0 0.0
    %117 = vmatpush1.xpose.msra.mxu0 0.0
    %118 = vmatprep.subr.mxu0 0.0
    %119 = vmatpush1.xpose.msra.mxu0 0.0
    %120 = vmatprep.subr.mxu0 0.0
    %121 = vmatpush1.xpose.msra.mxu0 0.0
    %122 = vmatprep.subr.mxu0 0.0
    %123 = vmatpush1.xpose.msra.mxu0 0.0
    %124 = vmatprep.subr.mxu0 0.0
    %125 = vmatpush1.xpose.msra.mxu0 0.0
    %126 = vmatprep.subr.mxu0 0.0
    %127 = vmatpush1.xpose.msra.mxu0 0.0
    %128 = vmatprep.mubr.f32.mxu0 0.0
    %v129 = vand.u32 %v50, 4294901760
    %v130 = vsub.f32 %v50, %v129
    %v131 = vand.u32 %v130, 4294901760
    %v132 = vsub.f32 %v130, %v131
    %v133 = vand.u32 %v132, 4294901760
    %134 = vmatmul.mubr.f32.gmra.mrb[0].mxu0 %v133
    %v135 = vpop.f32.mrb[0].mxu0
    %v136 = vadd.f32 0.0, %v135
    %v137 = vpop.f32.mrb[0].mxu0
    %138 = vdwg.mxu0
    %139 = vmatprep.subr.mxu0 0.0
    %v140 = vand.u32 %v53, 4294901760
    %v141 = vsub.f32 %v53, %v140
    %v142 = vand.u32 %v141, 4294901760
    %v143 = vsub.f32 %v141, %v142
    %v144 = vand.u32 %v143, 4294901760
    %145 = vmatpush1.xpose.msra.mxu0 %v144
    %146 = vmatprep.subr.mxu0 0.0
    %v147 = vand.u32 %v56, 4294901760
    %v148 = vsub.f32 %v56, %v147
    %v149 = vand.u32 %v148, 4294901760
    %v150 = vsub.f32 %v148, %v149
    %v151 = vand.u32 %v150, 4294901760
    %152 = vmatpush1.xpose.msra.mxu0 %v151
    %153 = vmatprep.subr.mxu0 0.0
    %v154 = vand.u32 %v59, 4294901760
    %v155 = vsub.f32 %v59, %v154
    %v156 = vand.u32 %v155, 4294901760
    %v157 = vsub.f32 %v155, %v156
    %v158 = vand.u32 %v157, 4294901760
    %159 = vmatpush1.xpose.msra.mxu0 %v158
    %160 = vmatprep.subr.mxu0 0.0
    %161 = vmatpush1.xpose.msra.mxu0 0.0
    %162 = vmatprep.subr.mxu0 0.0
    %163 = vmatpush1.xpose.msra.mxu0 0.0
    %164 = vmatprep.subr.mxu0 0.0
    %165 = vmatpush1.xpose.msra.mxu0 0.0
    %166 = vmatprep.subr.mxu0 0.0
    %167 = vmatpush1.xpose.msra.mxu0 0.0
    %168 = vmatprep.subr.mxu0 0.0
    %169 = vmatpush1.xpose.msra.mxu0 0.0
    %170 = vmatprep.subr.mxu0 0.0
    %171 = vmatpush1.xpose.msra.mxu0 0.0
    %172 = vmatprep.subr.mxu0 0.0
    %173 = vmatpush1.xpose.msra.mxu0 0.0
    %174 = vmatprep.subr.mxu0 0.0
    %175 = vmatpush1.xpose.msra.mxu0 0.0
    %176 = vmatprep.subr.mxu0 0.0
    %177 = vmatpush1.xpose.msra.mxu0 0.0
    %178 = vmatprep.subr.mxu0 0.0
    %179 = vmatpush1.xpose.msra.mxu0 0.0
    %180 = vmatprep.subr.mxu0 0.0
    %181 = vmatpush1.xpose.msra.mxu0 0.0
    %182 = vmatprep.subr.mxu0 0.0
    %183 = vmatpush1.xpose.msra.mxu0 0.0
    %184 = vmatprep.subr.mxu0 0.0
    %185 = vmatpush1.xpose.msra.mxu0 0.0
    %186 = vmatprep.subr.mxu0 0.0
    %187 = vmatpush1.xpose.msra.mxu0 0.0
    %188 = vmatprep.subr.mxu0 0.0
    %189 = vmatpush1.xpose.msra.mxu0 0.0
    %190 = vmatprep.subr.mxu0 0.0
    %191 = vmatpush1.xpose.msra.mxu0 0.0
    %192 = vmatprep.subr.mxu0 0.0
    %193 = vmatpush1.xpose.msra.mxu0 0.0
    %194 = vmatprep.subr.mxu0 0.0
    %195 = vmatpush1.xpose.msra.mxu0 0.0
    %196 = vmatprep.subr.mxu0 0.0
    %197 = vmatpush1.xpose.msra.mxu0 0.0
    %198 = vmatprep.subr.mxu0 0.0
    %199 = vmatpush1.xpose.msra.mxu0 0.0
    %200 = vmatprep.subr.mxu0 0.0
    %201 = vmatpush1.xpose.msra.mxu0 0.0
    %202 = vmatprep.subr.mxu0 0.0
    %203 = vmatpush1.xpose.msra.mxu0 0.0
    %204 = vmatprep.subr.mxu0 0.0
    %205 = vmatpush1.xpose.msra.mxu0 0.0
    %206 = vmatprep.subr.mxu0 0.0
    %207 = vmatpush1.xpose.msra.mxu0 0.0
    %208 = vmatprep.subr.mxu0 0.0
    %209 = vmatpush1.xpose.msra.mxu0 0.0
    %210 = vmatprep.subr.mxu0 0.0
    %211 = vmatpush1.xpose.msra.mxu0 0.0
    %212 = vmatprep.subr.mxu0 0.0
    %213 = vmatpush1.xpose.msra.mxu0 0.0
    %214 = vmatprep.subr.mxu0 0.0
    %215 = vmatpush1.xpose.msra.mxu0 0.0
    %216 = vmatprep.subr.mxu0 0.0
    %217 = vmatpush1.xpose.msra.mxu0 0.0
    %218 = vmatprep.mubr.f32.mxu0 0.0
    %v219 = vand.u32 %v50, 4294901760
    %220 = vmatmul.mubr.f32.gmra.mrb[0].mxu0 %v219
    %v221 = vpop.f32.mrb[0].mxu0
    %v222 = vadd.f32 %v136, %v221
    %v223 = vpop.f32.mrb[0].mxu0
    %224 = vdwg.mxu0
    %225 = vmatprep.subr.mxu0 0.0
    %v226 = vand.u32 %v53, 4294901760
    %v227 = vsub.f32 %v53, %v226
    %228 = vmatpush1.xpose.msra.mxu0 %v227
    %229 = vmatprep.subr.mxu0 0.0
    %v230 = vand.u32 %v56, 4294901760
    %v231 = vsub.f32 %v56, %v230
    %232 = vmatpush1.xpose.msra.mxu0 %v231
    %233 = vmatprep.subr.mxu0 0.0
    %v234 = vand.u32 %v59, 4294901760
    %v235 = vsub.f32 %v59, %v234
    %236 = vmatpush1.xpose.msra.mxu0 %v235
    %237 = vmatprep.subr.mxu0 0.0
    %238 = vmatpush1.xpose.msra.mxu0 0.0
    %239 = vmatprep.subr.mxu0 0.0
    %240 = vmatpush1.xpose.msra.mxu0 0.0
    %241 = vmatprep.subr.mxu0 0.0
    %242 = vmatpush1.xpose.msra.mxu0 0.0
    %243 = vmatprep.subr.mxu0 0.0
    %244 = vmatpush1.xpose.msra.mxu0 0.0
    %245 = vmatprep.subr.mxu0 0.0
    %246 = vmatpush1.xpose.msra.mxu0 0.0
    %247 = vmatprep.subr.mxu0 0.0
    %248 = vmatpush1.xpose.msra.mxu0 0.0
    %249 = vmatprep.subr.mxu0 0.0
    %250 = vmatpush1.xpose.msra.mxu0 0.0
    %251 = vmatprep.subr.mxu0 0.0
    %252 = vmatpush1.xpose.msra.mxu0 0.0
    %253 = vmatprep.subr.mxu0 0.0
    %254 = vmatpush1.xpose.msra.mxu0 0.0
    %255 = vmatprep.subr.mxu0 0.0
    %256 = vmatpush1.xpose.msra.mxu0 0.0
    %257 = vmatprep.subr.mxu0 0.0
    %258 = vmatpush1.xpose.msra.mxu0 0.0
    %259 = vmatprep.subr.mxu0 0.0
    %260 = vmatpush1.xpose.msra.mxu0 0.0
    %261 = vmatprep.subr.mxu0 0.0
    %262 = vmatpush1.xpose.msra.mxu0 0.0
    %263 = vmatprep.subr.mxu0 0.0
    %264 = vmatpush1.xpose.msra.mxu0 0.0
    %265 = vmatprep.subr.mxu0 0.0
    %266 = vmatpush1.xpose.msra.mxu0 0.0
    %267 = vmatprep.subr.mxu0 0.0
    %268 = vmatpush1.xpose.msra.mxu0 0.0
    %269 = vmatprep.subr.mxu0 0.0
    %270 = vmatpush1.xpose.msra.mxu0 0.0
    %271 = vmatprep.subr.mxu0 0.0
    %272 = vmatpush1.xpose.msra.mxu0 0.0
    %273 = vmatprep.subr.mxu0 0.0
    %274 = vmatpush1.xpose.msra.mxu0 0.0
    %275 = vmatprep.subr.mxu0 0.0
    %276 = vmatpush1.xpose.msra.mxu0 0.0
    %277 = vmatprep.subr.mxu0 0.0
    %278 = vmatpush1.xpose.msra.mxu0 0.0
    %279 = vmatprep.subr.mxu0 0.0
    %280 = vmatpush1.xpose.msra.mxu0 0.0
    %281 = vmatprep.subr.mxu0 0.0
    %282 = vmatpush1.xpose.msra.mxu0 0.0
    %283 = vmatprep.subr.mxu0 0.0
    %284 = vmatpush1.xpose.msra.mxu0 0.0
    %285 = vmatprep.subr.mxu0 0.0
    %286 = vmatpush1.xpose.msra.mxu0 0.0
    %287 = vmatprep.subr.mxu0 0.0
    %288 = vmatpush1.xpose.msra.mxu0 0.0
    %289 = vmatprep.subr.mxu0 0.0
    %290 = vmatpush1.xpose.msra.mxu0 0.0
    %291 = vmatprep.subr.mxu0 0.0
    %292 = vmatpush1.xpose.msra.mxu0 0.0
    %293 = vmatprep.subr.mxu0 0.0
    %294 = vmatpush1.xpose.msra.mxu0 0.0
    %295 = vmatprep.mubr.f32.mxu0 0.0
    %v296 = vand.u32 %v50, 4294901760
    %v297 = vsub.f32 %v50, %v296
    %298 = vmatmul.mubr.f32.gmra.mrb[0].mxu0 %v297
    %v299 = vpop.f32.mrb[0].mxu0
    %v300 = vadd.f32 %v222, %v299
    %v301 = vpop.f32.mrb[0].mxu0
    %302 = vdwg.mxu0
    %303 = vmatprep.subr.mxu0 0.0
    %v304 = vand.u32 %v53, 4294901760
    %305 = vmatpush1.xpose.msra.mxu0 %v304
    %306 = vmatprep.subr.mxu0 0.0
    %v307 = vand.u32 %v56, 4294901760
    %308 = vmatpush1.xpose.msra.mxu0 %v307
    %309 = vmatprep.subr.mxu0 0.0
    %v310 = vand.u32 %v59, 4294901760
    %311 = vmatpush1.xpose.msra.mxu0 %v310
    %312 = vmatprep.subr.mxu0 0.0
    %313 = vmatpush1.xpose.msra.mxu0 0.0
    %314 = vmatprep.subr.mxu0 0.0
    %315 = vmatpush1.xpose.msra.mxu0 0.0
    %316 = vmatprep.subr.mxu0 0.0
    %317 = vmatpush1.xpose.msra.mxu0 0.0
    %318 = vmatprep.subr.mxu0 0.0
    %319 = vmatpush1.xpose.msra.mxu0 0.0
    %320 = vmatprep.subr.mxu0 0.0
    %321 = vmatpush1.xpose.msra.mxu0 0.0
    %322 = vmatprep.subr.mxu0 0.0
    %323 = vmatpush1.xpose.msra.mxu0 0.0
    %324 = vmatprep.subr.mxu0 0.0
    %325 = vmatpush1.xpose.msra.mxu0 0.0
    %326 = vmatprep.subr.mxu0 0.0
    %327 = vmatpush1.xpose.msra.mxu0 0.0
    %328 = vmatprep.subr.mxu0 0.0
    %329 = vmatpush1.xpose.msra.mxu0 0.0
    %330 = vmatprep.subr.mxu0 0.0
    %331 = vmatpush1.xpose.msra.mxu0 0.0
    %332 = vmatprep.subr.mxu0 0.0
    %333 = vmatpush1.xpose.msra.mxu0 0.0
    %334 = vmatprep.subr.mxu0 0.0
    %335 = vmatpush1.xpose.msra.mxu0 0.0
    %336 = vmatprep.subr.mxu0 0.0
    %337 = vmatpush1.xpose.msra.mxu0 0.0
    %338 = vmatprep.subr.mxu0 0.0
    %339 = vmatpush1.xpose.msra.mxu0 0.0
    %340 = vmatprep.subr.mxu0 0.0
    %341 = vmatpush1.xpose.msra.mxu0 0.0
    %342 = vmatprep.subr.mxu0 0.0
    %343 = vmatpush1.xpose.msra.mxu0 0.0
    %344 = vmatprep.subr.mxu0 0.0
    %345 = vmatpush1.xpose.msra.mxu0 0.0
    %346 = vmatprep.subr.mxu0 0.0
    %347 = vmatpush1.xpose.msra.mxu0 0.0
    %348 = vmatprep.subr.mxu0 0.0
    %349 = vmatpush1.xpose.msra.mxu0 0.0
    %350 = vmatprep.subr.mxu0 0.0
    %351 = vmatpush1.xpose.msra.mxu0 0.0
    %352 = vmatprep.subr.mxu0 0.0
    %353 = vmatpush1.xpose.msra.mxu0 0.0
    %354 = vmatprep.subr.mxu0 0.0
    %355 = vmatpush1.xpose.msra.mxu0 0.0
    %356 = vmatprep.subr.mxu0 0.0
    %357 = vmatpush1.xpose.msra.mxu0 0.0
    %358 = vmatprep.subr.mxu0 0.0
    %359 = vmatpush1.xpose.msra.mxu0 0.0
    %360 = vmatprep.subr.mxu0 0.0
    %361 = vmatpush1.xpose.msra.mxu0 0.0
    %362 = vmatprep.subr.mxu0 0.0
    %363 = vmatpush1.xpose.msra.mxu0 0.0
    %364 = vmatprep.subr.mxu0 0.0
    %365 = vmatpush1.xpose.msra.mxu0 0.0
    %366 = vmatprep.subr.mxu0 0.0
    %367 = vmatpush1.xpose.msra.mxu0 0.0
    %368 = vmatprep.subr.mxu0 0.0
    %369 = vmatpush1.xpose.msra.mxu0 0.0
    %370 = vmatprep.mubr.f32.mxu0 0.0
    %v371 = vand.u32 %v50, 4294901760
    %v372 = vsub.f32 %v50, %v371
    %v373 = vand.u32 %v372, 4294901760
    %374 = vmatmul.mubr.f32.gmra.mrb[0].mxu0 %v373
    %v375 = vpop.f32.mrb[0].mxu0
    %v376 = vadd.f32 %v300, %v375
    %v377 = vpop.f32.mrb[0].mxu0
    %378 = vdwg.mxu0
    %379 = vmatprep.subr.mxu0 0.0
    %v380 = vand.u32 %v53, 4294901760
    %v381 = vsub.f32 %v53, %v380
    %v382 = vand.u32 %v381, 4294901760
    %383 = vmatpush1.xpose.msra.mxu0 %v382
    %384 = vmatprep.subr.mxu0 0.0
    %v385 = vand.u32 %v56, 4294901760
    %v386 = vsub.f32 %v56, %v385
    %v387 = vand.u32 %v386, 4294901760
    %388 = vmatpush1.xpose.msra.mxu0 %v387
    %389 = vmatprep.subr.mxu0 0.0
    %v390 = vand.u32 %v59, 4294901760
    %v391 = vsub.f32 %v59, %v390
    %v392 = vand.u32 %v391, 4294901760
    %393 = vmatpush1.xpose.msra.mxu0 %v392
    %394 = vmatprep.subr.mxu0 0.0
    %395 = vmatpush1.xpose.msra.mxu0 0.0
    %396 = vmatprep.subr.mxu0 0.0
    %397 = vmatpush1.xpose.msra.mxu0 0.0
    %398 = vmatprep.subr.mxu0 0.0
    %399 = vmatpush1.xpose.msra.mxu0 0.0
    %400 = vmatprep.subr.mxu0 0.0
    %401 = vmatpush1.xpose.msra.mxu0 0.0
    %402 = vmatprep.subr.mxu0 0.0
    %403 = vmatpush1.xpose.msra.mxu0 0.0
    %404 = vmatprep.subr.mxu0 0.0
    %405 = vmatpush1.xpose.msra.mxu0 0.0
    %406 = vmatprep.subr.mxu0 0.0
    %407 = vmatpush1.xpose.msra.mxu0 0.0
    %408 = vmatprep.subr.mxu0 0.0
    %409 = vmatpush1.xpose.msra.mxu0 0.0
    %410 = vmatprep.subr.mxu0 0.0
    %411 = vmatpush1.xpose.msra.mxu0 0.0
    %412 = vmatprep.subr.mxu0 0.0
    %413 = vmatpush1.xpose.msra.mxu0 0.0
    %414 = vmatprep.subr.mxu0 0.0
    %415 = vmatpush1.xpose.msra.mxu0 0.0
    %416 = vmatprep.subr.mxu0 0.0
    %417 = vmatpush1.xpose.msra.mxu0 0.0
    %418 = vmatprep.subr.mxu0 0.0
    %419 = vmatpush1.xpose.msra.mxu0 0.0
    %420 = vmatprep.subr.mxu0 0.0
    %421 = vmatpush1.xpose.msra.mxu0 0.0
    %422 = vmatprep.subr.mxu0 0.0
    %423 = vmatpush1.xpose.msra.mxu0 0.0
    %424 = vmatprep.subr.mxu0 0.0
    %425 = vmatpush1.xpose.msra.mxu0 0.0
    %426 = vmatprep.subr.mxu0 0.0
    %427 = vmatpush1.xpose.msra.mxu0 0.0
    %428 = vmatprep.subr.mxu0 0.0
    %429 = vmatpush1.xpose.msra.mxu0 0.0
    %430 = vmatprep.subr.mxu0 0.0
    %431 = vmatpush1.xpose.msra.mxu0 0.0
    %432 = vmatprep.subr.mxu0 0.0
    %433 = vmatpush1.xpose.msra.mxu0 0.0
    %434 = vmatprep.subr.mxu0 0.0
    %435 = vmatpush1.xpose.msra.mxu0 0.0
    %436 = vmatprep.subr.mxu0 0.0
    %437 = vmatpush1.xpose.msra.mxu0 0.0
    %438 = vmatprep.subr.mxu0 0.0
    %439 = vmatpush1.xpose.msra.mxu0 0.0
    %440 = vmatprep.subr.mxu0 0.0
    %441 = vmatpush1.xpose.msra.mxu0 0.0
    %442 = vmatprep.subr.mxu0 0.0
    %443 = vmatpush1.xpose.msra.mxu0 0.0
    %444 = vmatprep.subr.mxu0 0.0
    %445 = vmatpush1.xpose.msra.mxu0 0.0
    %446 = vmatprep.subr.mxu0 0.0
    %447 = vmatpush1.xpose.msra.mxu0 0.0
    %448 = vmatprep.subr.mxu0 0.0
    %449 = vmatpush1.xpose.msra.mxu0 0.0
    %450 = vmatprep.subr.mxu0 0.0
    %451 = vmatpush1.xpose.msra.mxu0 0.0
    %452 = vmatprep.mubr.f32.mxu0 0.0
    %v453 = vand.u32 %v50, 4294901760
    %454 = vmatmul.mubr.f32.gmra.mrb[0].mxu0 %v453
    %v455 = vpop.f32.mrb[0].mxu0
    %v456 = vadd.f32 %v376, %v455
    %v457 = vpop.f32.mrb[0].mxu0
    %458 = vdwg.mxu0
    %459 = vmatprep.subr.mxu0 0.0
    %v460 = vand.u32 %v53, 4294901760
    %461 = vmatpush1.xpose.msra.mxu0 %v460
    %462 = vmatprep.subr.mxu0 0.0
    %v463 = vand.u32 %v56, 4294901760
    %464 = vmatpush1.xpose.msra.mxu0 %v463
    %465 = vmatprep.subr.mxu0 0.0
    %v466 = vand.u32 %v59, 4294901760
    %467 = vmatpush1.xpose.msra.mxu0 %v466
    %468 = vmatprep.subr.mxu0 0.0
    %469 = vmatpush1.xpose.msra.mxu0 0.0
    %470 = vmatprep.subr.mxu0 0.0
    %471 = vmatpush1.xpose.msra.mxu0 0.0
    %472 = vmatprep.subr.mxu0 0.0
    %473 = vmatpush1.xpose.msra.mxu0 0.0
    %474 = vmatprep.subr.mxu0 0.0
    %475 = vmatpush1.xpose.msra.mxu0 0.0
    %476 = vmatprep.subr.mxu0 0.0
    %477 = vmatpush1.xpose.msra.mxu0 0.0
    %478 = vmatprep.subr.mxu0 0.0
    %479 = vmatpush1.xpose.msra.mxu0 0.0
    %480 = vmatprep.subr.mxu0 0.0
    %481 = vmatpush1.xpose.msra.mxu0 0.0
    %482 = vmatprep.subr.mxu0 0.0
    %483 = vmatpush1.xpose.msra.mxu0 0.0
    %484 = vmatprep.subr.mxu0 0.0
    %485 = vmatpush1.xpose.msra.mxu0 0.0
    %486 = vmatprep.subr.mxu0 0.0
    %487 = vmatpush1.xpose.msra.mxu0 0.0
    %488 = vmatprep.subr.mxu0 0.0
    %489 = vmatpush1.xpose.msra.mxu0 0.0
    %490 = vmatprep.subr.mxu0 0.0
    %491 = vmatpush1.xpose.msra.mxu0 0.0
    %492 = vmatprep.subr.mxu0 0.0
    %493 = vmatpush1.xpose.msra.mxu0 0.0
    %494 = vmatprep.subr.mxu0 0.0
    %495 = vmatpush1.xpose.msra.mxu0 0.0
    %496 = vmatprep.subr.mxu0 0.0
    %497 = vmatpush1.xpose.msra.mxu0 0.0
    %498 = vmatprep.subr.mxu0 0.0
    %499 = vmatpush1.xpose.msra.mxu0 0.0
    %500 = vmatprep.subr.mxu0 0.0
    %501 = vmatpush1.xpose.msra.mxu0 0.0
    %502 = vmatprep.subr.mxu0 0.0
    %503 = vmatpush1.xpose.msra.mxu0 0.0
    %504 = vmatprep.subr.mxu0 0.0
    %505 = vmatpush1.xpose.msra.mxu0 0.0
    %506 = vmatprep.subr.mxu0 0.0
    %507 = vmatpush1.xpose.msra.mxu0 0.0
    %508 = vmatprep.subr.mxu0 0.0
    %509 = vmatpush1.xpose.msra.mxu0 0.0
    %510 = vmatprep.subr.mxu0 0.0
    %511 = vmatpush1.xpose.msra.mxu0 0.0
    %512 = vmatprep.subr.mxu0 0.0
    %513 = vmatpush1.xpose.msra.mxu0 0.0
    %514 = vmatprep.subr.mxu0 0.0
    %515 = vmatpush1.xpose.msra.mxu0 0.0
    %516 = vmatprep.subr.mxu0 0.0
    %517 = vmatpush1.xpose.msra.mxu0 0.0
    %518 = vmatprep.subr.mxu0 0.0
    %519 = vmatpush1.xpose.msra.mxu0 0.0
    %520 = vmatprep.subr.mxu0 0.0
    %521 = vmatpush1.xpose.msra.mxu0 0.0
    %522 = vmatprep.subr.mxu0 0.0
    %523 = vmatpush1.xpose.msra.mxu0 0.0
    %524 = vmatprep.subr.mxu0 0.0
    %525 = vmatpush1.xpose.msra.mxu0 0.0
    %526 = vmatprep.mubr.f32.mxu0 0.0
    %v527 = vand.u32 %v50, 4294901760
    %528 = vmatmul.mubr.f32.gmra.mrb[0].mxu0 %v527
    %v529 = vpop.f32.mrb[0].mxu0
    %v530 = vadd.f32 %v456, %v529
    %v531 = vpop.f32.mrb[0].mxu0
    %532 = vdwg.mxu0
    %v533 = vadd.f32 %v47, %v530
    %vm534 = vcmask 195584
    %535 = vst.msk [vmem:[#allocation2] sm:$0xff] %vm534, %v533
    // Predicated region
    $region22: #{tpu_custom_call.1} parent=1 // pred_check
      %p536 = pneg %p36
    $region23: #{tpu_custom_call.1} parent=1 // pred_check_branch
      %538 = sbr.rel (%p536) target = $region25
    $region24: #{tpu_custom_call.1} parent=1 // pred_region
      %v539 = vld [vmem:[#allocation2] sm:$0x1]
      %541 = vrot.lane.b32.xlu0 %v539, 120
      %v542 = vpop.permute.xlu0 %541
      %v544 = vmul.f32 %v539, %v542
      %v545 = vmax.f32 %v544, 1e-16
      %v546 = vrsqrt.pop %v545
      %548 = vrot.lane.b32.xlu0 %v546, 120
      %v549 = vpop.permute.xlu0 %548
      %v551 = vmul.f32 %v539, %v549
      %v552 = vsub.f32 1.0, %v551
      %vm553 = vcmask 57344
      %554 = vst.msk [vmem:[#allocation8] sm:$0x1] %vm553, %v552
    $region25: #{tpu_custom_call.1} parent=1 // pred_fallthru
      _
    // Predicated region
    $region26: #{tpu_custom_call.1} parent=1 // pred_check
      _
    $region27: #{tpu_custom_call.1} parent=1 // pred_check_branch
      %556 = sbr.rel (0) target = $region29
    $region28: #{tpu_custom_call.1} parent=1 // pred_region
      %s558 = ssub.s32 16, 16
      %559 = vsyncadd [#allocation5], %s558
      %s561 = sshll.u32 [#allocation8], 4
      %s562 = int_to_ptr.vmem [resolvable:$true] %s561
      %564 = dma.vmem_to_hbm [thread:$0]  %s562, 16, %s2, [#allocation5]
    $region29: #{tpu_custom_call.1} parent=1 // pred_fallthru
      _
    // Predicated region
    $region30: #{tpu_custom_call.1} parent=1 // pred_check
      _
    $region31: #{tpu_custom_call.1} parent=1 // pred_check_branch
      %566 = sbr.rel (0) target = $region33
    $region32: #{tpu_custom_call.1} parent=1 // pred_region
      %567 = dma.done [#allocation5], 16
    $region33: #{tpu_custom_call.1} parent=1 // pred_fallthru
      _
    %568 = vsyncpa [#allocation4], 1
    %569 = vsyncpa [#allocation7], 1
    %570 = vsyncpa [#allocation5], 1

</llo_original>
